<compile_context>
chip_gen: v6e
topology: v6e:2x2x1
jax: 0.10.0
libtpu: 0.0.40
codegen_flags: <defaults>
</compile_context>

<pallas_src>
from functools import partial

import jax
import jax.numpy as jnp
from jax.experimental import pallas as pl
from jax.experimental.pallas import tpu as pltpu


LANES = 128                      # vreg lane width
SUBLANES_F32 = 8                 # f32 sublane packing (bf16 packs 16, int8 32)
MAX_BLOCK_BYTES = 1 << 20        # ~1 MiB grad-accum block (was 256 KiB; review)
SPLIT_MIN_ROWS = 512             # split big buffers into >=2 blocks (v7x: 2 TCs)
VMEM_LIMIT_BYTES = 32 * 1024 * 1024


def _round_up(n, m):
    return ((n + m - 1) // m) * m


def _sublanes_for(dtype):
    # (8,128) tiling is for 32-bit dtypes; narrower dtypes pack more sublanes
    # (review correctness concern: SUBLANES=8 is fp32-only).
    return SUBLANES_F32 * (4 // jnp.dtype(dtype).itemsize)


def _view2d_shape(shape):
    """Natural 2D view used for the lane-dense main-grad layout."""
    if len(shape) == 0:
        return (1, 1)
    if len(shape) == 1:
        return (1, shape[0])
    lead = 1
    for d in shape[:-1]:
        lead *= d
    return (lead, shape[-1])


# ----------------------------------------------------------------------------
# Fused 2-layer MLP forward kernel (the wrapped module's forward)
# ----------------------------------------------------------------------------
def _fused_mlp_kernel(x_ref, w1_ref, b1_ref, w2_ref, b2_ref, o_ref):
    # Layer 1: bf16 MXU matmul with f32 accumulation; bias add + relu on VPU.
    # The hidden activation stays an SSA value in vregs -- no VMEM scratch
    # store/reload round-trip (review: drop h_ref).
    h = jnp.dot(x_ref[...], w1_ref[...], preferred_element_type=jnp.float32)
    h = jnp.maximum(h + b1_ref[...], 0.0)
    # Layer 2: feed the MXU straight from vregs, again bf16-in / f32-acc.
    acc = jnp.dot(h.astype(w2_ref.dtype), w2_ref[...],
                  preferred_element_type=jnp.float32)
    o_ref[...] = (acc + b2_ref[...]).astype(o_ref.dtype)


def _fused_mlp_forward(x, w1p, b1row, w2p, b2row, *, d_out, mxu_dtype,
                       max_batch_tile, out_dtype):
    """y = relu(x @ w1 + b1) @ w2 + b2 in a single Pallas kernel launch."""
    B, Din = x.shape
    Din_p, Dh_p = w1p.shape
    Dout_p = w2p.shape[1]

    sub = _sublanes_for(mxu_dtype)
    rb = _round_up(B, sub)
    tm = min(rb, max_batch_tile)
    # v7x has 2 TensorCores: keep >= 2 grid steps on the "parallel" batch axis
    # whenever the batch is large enough to split (review).
    if tm == rb and rb >= 2 * sub:
        tm = _round_up(pl.cdiv(B, 2), sub)
    B_p = _round_up(B, tm)

    xp = x.astype(mxu_dtype)
    if (B_p, Din_p) != (B, Din):
        xp = jnp.zeros((B_p, Din_p), mxu_dtype).at[:B, :Din].set(xp)

    # Pre-broadcast the cached, padded bias rows to the batch tile so the
    # in-kernel add is a plain elementwise vreg op (no per-step sublane
    # broadcast from a (1, N) layout).  Tiny arrays; weights stay cached.
    b1t = jnp.broadcast_to(b1row, (tm, Dh_p))
    b2t = jnp.broadcast_to(b2row, (tm, Dout_p))

    # Grid over the batch only; weights/biases are grid-invariant (constant
    # index_map) so their blocks are fetched once and stay VMEM-resident.
    # TODO(synk): pipeline_mode=pl.Buffered(1) on the grid-invariant weight
    #             specs to avoid pointless double-buffering (matters on v7x 64 MiB).
    # TODO(synk): K/N-tiled GEMM path ((M,N,K) grid + f32 acc scratch + pl.when
    #             init/finalize) once layers no longer fit VMEM-resident weights.
    # TODO(synk): pad lane dims to 256 on v6e/v7x (256x256 MXU) for large layers.
    out = pl.pallas_call(
        _fused_mlp_kernel,
        out_shape=jax.ShapeDtypeStruct((B_p, Dout_p), out_dtype),
        grid=(B_p // tm,),
        in_specs=[
            pl.BlockSpec((tm, Din_p), lambda i: (i, 0)),
            pl.BlockSpec((Din_p, Dh_p), lambda i: (0, 0)),
            pl.BlockSpec((tm, Dh_p), lambda i: (0, 0)),
            pl.BlockSpec((Dh_p, Dout_p), lambda i: (0, 0)),
            pl.BlockSpec((tm, Dout_p), lambda i: (0, 0)),
        ],
        out_specs=pl.BlockSpec((tm, Dout_p), lambda i: (i, 0)),
        compiler_params=pltpu.CompilerParams(
            dimension_semantics=("parallel",),
            vmem_limit_bytes=VMEM_LIMIT_BYTES),
    )(xp, w1p, b1t, w2p, b2t)

    if (B_p, Dout_p) == (B, d_out):
        return out                      # already lane/sublane aligned: no slice copy
    return out[:B, :d_out]


class FusedMLP:
    """Wrapped module: 2-layer MLP; forward fused into one Pallas kernel.

    Weights are padded to lane-dense tiles and cast to the MXU dtype ONCE at
    construction (review: no per-forward jnp.zeros().at[].set() rebuilds)."""

    def __init__(self, params, mxu_dtype=jnp.bfloat16, max_batch_tile=128,
                 out_dtype=jnp.float32):
        w1, b1, w2, b2 = params["w1"], params["b1"], params["w2"], params["b2"]
        d_in, d_hidden = w1.shape
        d_out = w2.shape[1]
        Din_p = _round_up(d_in, LANES)
        Dh_p = _round_up(d_hidden, LANES)
        Dout_p = _round_up(d_out, LANES)

        self.w1p = jnp.zeros((Din_p, Dh_p), mxu_dtype).at[:d_in, :d_hidden].set(
            w1.astype(mxu_dtype))
        self.w2p = jnp.zeros((Dh_p, Dout_p), mxu_dtype).at[:d_hidden, :d_out].set(
            w2.astype(mxu_dtype))
        # Bias adds stay in f32 (applied after the f32-accumulated dots).
        self.b1row = jnp.zeros((1, Dh_p), jnp.float32).at[0, :d_hidden].set(
            b1.astype(jnp.float32))
        self.b2row = jnp.zeros((1, Dout_p), jnp.float32).at[0, :d_out].set(
            b2.astype(jnp.float32))

        self._fwd = jax.jit(partial(
            _fused_mlp_forward, d_out=d_out, mxu_dtype=mxu_dtype,
            max_batch_tile=max_batch_tile, out_dtype=out_dtype))

    def __call__(self, params, x):
        # `params` is accepted for wrapper-interface parity; the padded/cast
        # copies cached at construction are used (params are not mutated here).
        del params
        return self._fwd(x, self.w1p, self.b1row, self.w2p, self.b2row)


# ----------------------------------------------------------------------------
# In-place main-grad accumulation (the accumulate-grad hook, fused with packing)
# ----------------------------------------------------------------------------
def _accum_kernel(mg_ref, g_ref, o_ref):
    """main_grad.add_(grad) on one lane-dense block; `o` aliases `mg` in HBM.

    The grad block keeps the param's natural 2D view (rows x last-dim), so no
    host-side concatenate/pad pass is materialized (review: fuse packing into
    the accumulate); only the valid (vr, vc) window is updated."""
    vr, vc = g_ref.shape
    m = mg_ref[...]
    if (vr, vc) == tuple(o_ref.shape):
        o_ref[...] = m + g_ref[...].astype(m.dtype)
    else:
        o_ref[...] = m                                    # keep padding intact
        o_ref[:vr, :vc] = m[:vr, :vc] + g_ref[...].astype(m.dtype)


def _grad_row_tile(vr, row_bytes):
    """Rows per block for the accumulate kernel (None -> single full block)."""
    if vr % SUBLANES_F32 != 0:
        return None                        # tiny / ragged param: one full block
    cap = max(SUBLANES_F32, MAX_BLOCK_BYTES // row_bytes)
    if vr >= SPLIT_MIN_ROWS:
        cap = min(cap, vr // 2)            # >= 2 grid steps (v7x: 2 TensorCores)
    t = max(SUBLANES_F32, min(vr, cap) // SUBLANES_F32 * SUBLANES_F32)
    while vr % t:
        t -= SUBLANES_F32                  # largest divisor of vr, multiple of 8
    return t


def _accumulate_into_main(main, grad2d):
    pr, pc = main.shape
    vr, vc = grad2d.shape
    tile = _grad_row_tile(vr, pc * main.dtype.itemsize)
    if tile is None:
        grid, m_blk, g_blk = (1,), (pr, pc), (vr, vc)
    else:
        grid, m_blk, g_blk = (vr // tile,), (tile, pc), (tile, vc)
    return pl.pallas_call(
        _accum_kernel,
        out_shape=jax.ShapeDtypeStruct((pr, pc), main.dtype),
        grid=grid,
        in_specs=[pl.BlockSpec(m_blk, lambda i: (i, 0)),
                  pl.BlockSpec(g_blk, lambda i: (i, 0))],
        out_specs=pl.BlockSpec(m_blk, lambda i: (i, 0)),
        input_output_aliases={0: 0},        # in-place: no fresh HBM buffer
        compiler_params=pltpu.CompilerParams(
            dimension_semantics=("parallel",),
            vmem_limit_bytes=VMEM_LIMIT_BYTES),
    )(main, grad2d)


# Donate the main-grad buffer so the aliased update is truly in place.
_accumulate_jit = jax.jit(_accumulate_into_main, donate_argnums=(0,))


# ----------------------------------------------------------------------------
# Bucket / BucketManager / DataParallelBucket analogs (host-side glue)
# ----------------------------------------------------------------------------
class Bucket:
    def __init__(self, param_names, index, grad_type=jnp.float32):
        self.param_names = list(param_names)
        self.index = index
        self.grad_type = grad_type
        self.ready_params = set()
        self.handle = None          # async collective handle (unused: emulation)

    def mark_ready(self, name, owner):
        assert name not in self.ready_params, "Hmm.. adding same param to bucket!"
        self.ready_params.add(name)
        if len(self.ready_params) == len(self.param_names):
            print("Syncing bucket...")
            owner._sync_bucket(self)
            self.ready_params.clear()


class BucketManager:
    def __init__(self, param_items, bucket_size_elements, grad_type):
        self.buckets = []
        current, current_size = [], 0
        for name, p in param_items:
            numel = p.size
            if current and current_size + numel > bucket_size_elements:
                self.buckets.append(Bucket(current, len(self.buckets), grad_type))
                current, current_size = [name], numel
            else:
                current.append(name)
                current_size += numel
        if current:
            self.buckets.append(Bucket(current, len(self.buckets), grad_type))

    def mark_param_as_ready(self, name, owner):
        for bucket in self.buckets:
            if name in bucket.param_names:
                bucket.mark_ready(name, owner)
                break

    def wait(self):
        for bucket in self.buckets:
            bucket.handle = None    # emulation: nothing in flight


class DataParallelBucket:
    """JAX analog of the PyTorch DataParallelBucket wrapper.

    Each param owns a persistent lane-dense fp32 main-grad buffer (analog of
    p.main_grad); the accumulate-grad hook adds straight into it with one
    in-place Pallas kernel.  The single-device bucket sync is the identity
    (all_reduce(SUM)/world_size over identical replicas == local grad), so the
    separate mean pass over bucket bytes is skipped entirely (review)."""

    def __init__(self, params, forward_fn, bucket_cap_size_mb=25,
                 grad_type=jnp.float32, world_size=2):
        self.params = dict(params)              # name -> array
        self.forward_fn = forward_fn
        self.grad_type = grad_type
        self.world_size = world_size
        # Computed once as a single reciprocal (review: f32(ws) * f32(1/ws) is
        # not exactly 1.0 for non-power-of-two world sizes); only used by the
        # real multi-chip collective path (TODO below).
        self.inv_world_size = 1.0 / float(world_size)
        self.require_backward_grad_sync = True
        self.grads = {}

        grad_element_size = jnp.dtype(grad_type).itemsize
        bucket_size_elements = bucket_cap_size_mb * 1024 * 1024 // grad_element_size
        self.bucket_manager = BucketManager(
            list(self.params.items()), bucket_size_elements, grad_type)

        # Persistent per-param main-grad buffers: natural 2D view padded to
        # lane-dense (sublane-multiple x 128-multiple) tiles; built once.
        sub = _sublanes_for(grad_type)
        self.grad_meta = {}
        self.main_grads = {}
        for name, p in self.params.items():
            vr, vc = _view2d_shape(p.shape)
            self.grad_meta[name] = (vr, vc, p.shape)
            self.main_grads[name] = jnp.zeros(
                (_round_up(vr, sub), _round_up(vc, LANES)), grad_type)

    # forward(*inputs) -> self.module(*inputs)
    def forward(self, *inputs):
        return self.forward_fn(self.params, *inputs)

    # analog of the per-param accumulate-grad hook: main_grad.add_(grad),
    # done directly on the lane-dense buffer (no bucket-wide pack pass).
    def param_hook(self, name, grad):
        vr, vc, _ = self.grad_meta[name]
        grad2d = grad.reshape(vr, vc)
        self.main_grads[name] = _accumulate_jit(self.main_grads[name], grad2d)
        if self.require_backward_grad_sync:
            self.bucket_manager.mark_param_as_ready(name, self)
        return grad

    def _sync_bucket(self, bucket):
        # Single-device emulation: all_reduce(SUM) over identical replicas
        # followed by /world_size is the identity, so no pass over the bucket
        # bytes is issued at all (review: skip the pallas_call; scale == 1.0).
        # TODO(synk): real multi-chip path = ring/blast all-reduce with
        # pltpu.make_async_remote_copy + pltpu.get_barrier_semaphore +
        # CompilerParams(collective_id=...), scaling by self.inv_world_size
        # and fusing the copy-back into the same kernel.
        bucket.handle = None

    def synchronize(self):
        self.bucket_manager.wait()
        # p.grad = p.main_grad.to(p.dtype)
        self.grads = {}
        for name, p in self.params.items():
            vr, vc, shape = self.grad_meta[name]
            self.grads[name] = (self.main_grads[name][:vr, :vc]
                                .reshape(shape).astype(p.dtype))


if __name__ == "__main__":
    key = jax.random.PRNGKey(0)
    k_x, k_w1, k_b1, k_w2, k_b2, k_g = jax.random.split(key, 6)

    batch, d_in, d_hidden, d_out = 8, 16, 32, 16
    params = {
        "w1": jax.random.normal(k_w1, (d_in, d_hidden), jnp.float32) * 0.1,
        "b1": jax.random.normal(k_b1, (d_hidden,), jnp.float32) * 0.1,
        "w2": jax.random.normal(k_w2, (d_hidden, d_out), jnp.float32) * 0.1,
        "b2": jax.random.normal(k_b2, (d_out,), jnp.float32) * 0.1,
    }
    x = jax.random.normal(k_x, (batch, d_in), jnp.float32)

    mlp = FusedMLP(params)            # padded/bf16 weights cached once here
    dp = DataParallelBucket(params, mlp, bucket_cap_size_mb=25,
                            grad_type=jnp.float32, world_size=2)

    # ---- forward pass (the actual forward() semantics of DataParallelBucket)
    y = dp.forward(x)
    y = jax.block_until_ready(y)

    # reference checks: kernel uses bf16 MXU inputs with f32 accumulation, so
    # compare tightly against a bf16-rounded reference and loosely against f32.
    xb = x.astype(jnp.bfloat16).astype(jnp.float32)
    w1b = params["w1"].astype(jnp.bfloat16).astype(jnp.float32)
    w2b = params["w2"].astype(jnp.bfloat16).astype(jnp.float32)
    h_b = jnp.maximum(xb @ w1b + params["b1"], 0.0)
    y_bref = h_b.astype(jnp.bfloat16).astype(jnp.float32) @ w2b + params["b2"]
    h_ref = jnp.maximum(x @ params["w1"] + params["b1"], 0.0)
    y_ref = h_ref @ params["w2"] + params["b2"]
    assert jnp.allclose(y, y_bref, atol=1e-2, rtol=1e-2), "forward mismatch (bf16 ref)"
    assert jnp.allclose(y, y_ref, atol=6e-2, rtol=6e-2), "forward mismatch (f32 ref)"

    # ---- simulate backward: fire the accumulate-grad hooks with synthetic grads
    grad_keys = jax.random.split(k_g, len(params))
    synthetic_grads = {n: jax.random.normal(k, params[n].shape, jnp.float32)
                       for n, k in zip(params.keys(), grad_keys)}
    for name in reversed(list(params.keys())):   # hooks fire in reverse order
        dp.param_hook(name, synthetic_grads[name])

    dp.synchronize()
    jax.block_until_ready(list(dp.grads.values()))

    # with identical replica copies, the all-reduce average equals the local grad
    for name in params:
        assert jnp.allclose(dp.grads[name], synthetic_grads[name], atol=1e-5), name

    print("KERNEL_OK")
</pallas_src>

<mosaic_0001>
module attributes {stable_mosaic.version = 11 : i64} {
  func.func @_fused_mlp_kernel(%arg0: i32, %arg1: memref<16x128xbf16, #tpu.memory_space<vmem>>, %arg2: memref<128x128xbf16, #tpu.memory_space<vmem>>, %arg3: memref<16x128xf32, #tpu.memory_space<vmem>>, %arg4: memref<128x128xbf16, #tpu.memory_space<vmem>>, %arg5: memref<16x128xf32, #tpu.memory_space<vmem>>, %arg6: memref<16x128xf32, #tpu.memory_space<vmem>>) attributes {dimension_semantics = [#tpu.dimension_semantics<parallel>], iteration_bounds = array<i64: 1>, scalar_prefetch = 0 : i64, scratch_operands = 0 : i64, tpu.core_type = #tpu.core_type<tc>, window_params = [{transform_indices = @transform_0, window_bounds = array<i64: 16, 128>}, {pipeline_mode = #tpu.pipeline_mode<synchronous>, transform_indices = @transform_1, window_bounds = array<i64: 128, 128>}, {pipeline_mode = #tpu.pipeline_mode<synchronous>, transform_indices = @transform_2, window_bounds = array<i64: 16, 128>}, {pipeline_mode = #tpu.pipeline_mode<synchronous>, transform_indices = @transform_3, window_bounds = array<i64: 128, 128>}, {pipeline_mode = #tpu.pipeline_mode<synchronous>, transform_indices = @transform_4, window_bounds = array<i64: 16, 128>}, {transform_indices = @transform_5, window_bounds = array<i64: 16, 128>}]} {
    %c0 = arith.constant 0 : index
    %c0_0 = arith.constant 0 : index
    %0 = vector.load %arg1[%c0, %c0_0] : memref<16x128xbf16, #tpu.memory_space<vmem>>, vector<16x128xbf16>
    %c0_1 = arith.constant 0 : index
    %c0_2 = arith.constant 0 : index
    %1 = vector.load %arg2[%c0_1, %c0_2] : memref<128x128xbf16, #tpu.memory_space<vmem>>, vector<128x128xbf16>
    %cst = arith.constant dense<0.000000e+00> : vector<16x128xf32>
    %2 = tpu.matmul %0, %1, %cst {dimension_numbers = #tpu.dot_dimension_numbers<[1], [0], [0], [1], [0, 0, 1, 1], [], []>} : vector<16x128xbf16>, vector<128x128xbf16>, vector<16x128xf32> -> vector<16x128xf32>
    %c0_3 = arith.constant 0 : index
    %c0_4 = arith.constant 0 : index
    %3 = vector.load %arg3[%c0_3, %c0_4] : memref<16x128xf32, #tpu.memory_space<vmem>>, vector<16x128xf32>
    %4 = arith.addf %2, %3 : vector<16x128xf32>
    %cst_5 = arith.constant 0.000000e+00 : f32
    %5 = vector.broadcast %cst_5 : f32 to vector<16x128xf32>
    %6 = arith.maximumf %4, %5 : vector<16x128xf32>
    %7 = arith.truncf %6 : vector<16x128xf32> to vector<16x128xbf16>
    %c0_6 = arith.constant 0 : index
    %c0_7 = arith.constant 0 : index
    %8 = vector.load %arg4[%c0_6, %c0_7] : memref<128x128xbf16, #tpu.memory_space<vmem>>, vector<128x128xbf16>
    %cst_8 = arith.constant dense<0.000000e+00> : vector<16x128xf32>
    %9 = tpu.matmul %7, %8, %cst_8 {dimension_numbers = #tpu.dot_dimension_numbers<[1], [0], [0], [1], [0, 0, 1, 1], [], []>} : vector<16x128xbf16>, vector<128x128xbf16>, vector<16x128xf32> -> vector<16x128xf32>
    %c0_9 = arith.constant 0 : index
    %c0_10 = arith.constant 0 : index
    %10 = vector.load %arg5[%c0_9, %c0_10] : memref<16x128xf32, #tpu.memory_space<vmem>>, vector<16x128xf32>
    %11 = arith.addf %9, %10 : vector<16x128xf32>
    %c0_11 = arith.constant 0 : index
    %c0_12 = arith.constant 0 : index
    %12 = vector.load %arg6[%c0_11, %c0_12] : memref<16x128xf32, #tpu.memory_space<vmem>>, vector<16x128xf32>
    tpu.vector_store %arg6[%c0_11, %c0_12], %11 {strides = array<i32>} : memref<16x128xf32, #tpu.memory_space<vmem>>, vector<16x128xf32>,
    return
  }
  func.func @transform_0(%arg0: i32) -> (i32, i32) {
    %c0_i32 = arith.constant 0 : i32
    %c0_i32_0 = arith.constant 0 : i32
    return %arg0, %c0_i32 : i32, i32
  }
  func.func @transform_1(%arg0: i32) -> (i32, i32) {
    %c0_i32 = arith.constant 0 : i32
    %c0_i32_0 = arith.constant 0 : i32
    %c0_i32_1 = arith.constant 0 : i32
    return %c0_i32, %c0_i32_0 : i32, i32
  }
  func.func @transform_2(%arg0: i32) -> (i32, i32) {
    %c0_i32 = arith.constant 0 : i32
    %c0_i32_0 = arith.constant 0 : i32
    %c0_i32_1 = arith.constant 0 : i32
    return %c0_i32, %c0_i32_0 : i32, i32
  }
  func.func @transform_3(%arg0: i32) -> (i32, i32) {
    %c0_i32 = arith.constant 0 : i32
    %c0_i32_0 = arith.constant 0 : i32
    %c0_i32_1 = arith.constant 0 : i32
    return %c0_i32, %c0_i32_0 : i32, i32
  }
  func.func @transform_4(%arg0: i32) -> (i32, i32) {
    %c0_i32 = arith.constant 0 : i32
    %c0_i32_0 = arith.constant 0 : i32
    %c0_i32_1 = arith.constant 0 : i32
    return %c0_i32, %c0_i32_0 : i32, i32
  }
  func.func @transform_5(%arg0: i32) -> (i32, i32) {
    %c0_i32 = arith.constant 0 : i32
    %c0_i32_0 = arith.constant 0 : i32
    return %arg0, %c0_i32 : i32, i32
  }
}

</mosaic_0001>

<llo_original>
// kernel: _fused_mlp_forward.1
$region0: #{_fused_mlp_forward.1}
  #allocation0 [shape = 'u32[]', space=smem, size = 0x4, offset = 0x4, fixed_abs, tag = 'smem constant byte address 0x4 - core index']
  #allocation1 [shape = 'u32[144,128]{1,0:T(1,128)}', space=vmem, size = 0x12000, scoped, tag = 'internal scratch']
  %s0 = inlined_call_operand.vmem [shape: bf16[16,128], index: 0, kind: input, shape index: {}]
  %s1 = inlined_call_operand.vmem [shape: bf16[128,128], index: 1, kind: input, shape index: {}]
  %s2 = inlined_call_operand.vmem [shape: f32[16,128], index: 2, kind: input, shape index: {}]
  %s3 = inlined_call_operand.hbm [shape: bf16[128,128], index: 3, kind: input, shape index: {}]
  %s4 = inlined_call_operand.vmem [shape: f32[16,128], index: 4, kind: input, shape index: {}]
  %s5 = inlined_call_operand.vmem [shape: f32[16,128], index: 5, kind: output, shape index: {}]
  %s6 = sld [smem:[#allocation0]]
  $region34: #{_fused_mlp_forward.1} parent=0
    _
  %s8 = ssub.s32 1, %s6
  %s9 = scalar_select 0, %s8, %s6
  $region1: #{_fused_mlp_forward.1} parent=0
    #allocation2 [shape = 'u8[32768]{0}', space=vmem, size = 0x8000, scoped, tag = 'input window, operand 3, single buffered']
    #allocation3 [shape = 's32[1]{0}', space=sflag, size = 0x4, scoped, tag = 'scoped memory for _fused_mlp_forward.1']
    %10 = vsyncpa [#allocation3], 0
    // Predicated region
    $region2: #{_fused_mlp_forward.1} parent=1 // pred_check
      _
    $region3: #{_fused_mlp_forward.1} parent=1 // pred_check_branch
      %12 = sbr.rel (0) target = $region5
    $region4: #{_fused_mlp_forward.1} parent=1 // pred_region
      _
    $region5: #{_fused_mlp_forward.1} parent=1 // pred_fallthru
      _
    // Predicated region
    $region6: #{_fused_mlp_forward.1} parent=1 // pred_check
      _
    $region7: #{_fused_mlp_forward.1} parent=1 // pred_check_branch
      %14 = sbr.rel (0) target = $region9
    $region8: #{_fused_mlp_forward.1} parent=1 // pred_region
      _
    $region9: #{_fused_mlp_forward.1} parent=1 // pred_fallthru
      _
    // Predicated region
    $region10: #{_fused_mlp_forward.1} parent=1 // pred_check
      _
    $region11: #{_fused_mlp_forward.1} parent=1 // pred_check_branch
      %16 = sbr.rel (0) target = $region13
    $region12: #{_fused_mlp_forward.1} parent=1 // pred_region
      _
    $region13: #{_fused_mlp_forward.1} parent=1 // pred_fallthru
      _
    // Predicated region
    $region14: #{_fused_mlp_forward.1} parent=1 // pred_check
      _
    $region15: #{_fused_mlp_forward.1} parent=1 // pred_check_branch
      %18 = sbr.rel (0) target = $region17
    $region16: #{_fused_mlp_forward.1} parent=1 // pred_region
      %s20 = ssub.s32 1024, 1024
      %21 = vsyncadd [#allocation3], %s20
      %s22 = sshll.u32 [#allocation2], 4
      %s23 = int_to_ptr.vmem [resolvable:$true] %s22
      %28 = dma.hbm_to_vmem [thread:$0]  %s3, 1024, %s23, [#allocation3], 64, 64, 4
    $region17: #{_fused_mlp_forward.1} parent=1 // pred_fallthru
      _
    // Predicated region
    $region18: #{_fused_mlp_forward.1} parent=1 // pred_check
      _
    $region19: #{_fused_mlp_forward.1} parent=1 // pred_check_branch
      %30 = sbr.rel (0) target = $region21
    $region20: #{_fused_mlp_forward.1} parent=1 // pred_region
      _
    $region21: #{_fused_mlp_forward.1} parent=1 // pred_fallthru
      _
    // Predicated region
    $region22: #{_fused_mlp_forward.1} parent=1 // pred_check
      _
    $region23: #{_fused_mlp_forward.1} parent=1 // pred_check_branch
      %32 = sbr.rel (0) target = $region25
    $region24: #{_fused_mlp_forward.1} parent=1 // pred_region
      %33 = dma.done [#allocation3], 1024
    $region25: #{_fused_mlp_forward.1} parent=1 // pred_fallthru
      _
    %v35 = vld [vmem:[%s0] sm:$0xf]
    %v36 = vld [vmem:[%s0 + $0x4] sm:$0xf]
    %v37 = vld [vmem:[%s1] sm:$0xf]
    %v38 = vld [vmem:[%s1 + $0x4] sm:$0xf]
    %v39 = vld [vmem:[%s1 + $0x8] sm:$0xf]
    %v40 = vld [vmem:[%s1 + $0xc] sm:$0xf]
    %v41 = vld [vmem:[%s1 + $0x10] sm:$0xf]
    %v42 = vld [vmem:[%s1 + $0x14] sm:$0xf]
    %v43 = vld [vmem:[%s1 + $0x18] sm:$0xf]
    %v44 = vld [vmem:[%s1 + $0x1c] sm:$0xf]
    %v45 = vld [vmem:[%s1 + $0x20] sm:$0xf]
    %v46 = vld [vmem:[%s1 + $0x24] sm:$0xf]
    %v47 = vld [vmem:[%s1 + $0x28] sm:$0xf]
    %v48 = vld [vmem:[%s1 + $0x2c] sm:$0xf]
    %v49 = vld [vmem:[%s1 + $0x30] sm:$0xf]
    %v50 = vld [vmem:[%s1 + $0x34] sm:$0xf]
    %v51 = vld [vmem:[%s1 + $0x38] sm:$0xf]
    %v52 = vld [vmem:[%s1 + $0x3c] sm:$0xf]
    %v53 = vld [vmem:[%s2] sm:$0xff]
    %v54 = vld [vmem:[%s2 + $0x8] sm:$0xff]
    %v57 = vunpack.c.l.b16 %v35
    %v58 = vunpack.c.l.b16 %v36
    %v59 = vpack.c.b16 %v58, %v57
    %v77 = vunpack.c.l.b16 %v37
    %v78 = vunpack.c.l.b16 %v38
    %v79 = vunpack.c.l.b16 %v39
    %v80 = vunpack.c.l.b16 %v40
    %v81 = vunpack.c.l.b16 %v41
    %v82 = vunpack.c.l.b16 %v42
    %v83 = vunpack.c.l.b16 %v43
    %v84 = vunpack.c.l.b16 %v44
    %v85 = vunpack.c.l.b16 %v45
    %v86 = vunpack.c.l.b16 %v46
    %v87 = vunpack.c.l.b16 %v47
    %v88 = vunpack.c.l.b16 %v48
    %v89 = vunpack.c.l.b16 %v49
    %v90 = vunpack.c.l.b16 %v50
    %v91 = vunpack.c.l.b16 %v51
    %v92 = vunpack.c.l.b16 %v52
    %v93 = vpack.c.b16 %v78, %v77
    %v94 = vpack.c.b16 %v80, %v79
    %v95 = vpack.c.b16 %v82, %v81
    %v96 = vpack.c.b16 %v84, %v83
    %v97 = vpack.c.b16 %v86, %v85
    %v98 = vpack.c.b16 %v88, %v87
    %v99 = vpack.c.b16 %v90, %v89
    %v100 = vpack.c.b16 %v92, %v91
    %109 = vmatprep.subr.bf16.mxu0 0
    %110 = vmatpush1.bf16.msra.mxu0 %v100
    %111 = vmatprep.subr.bf16.mxu0 0
    %112 = vmatpush1.bf16.msra.mxu0 %v99
    %113 = vmatprep.subr.bf16.mxu0 0
    %114 = vmatpush1.bf16.msra.mxu0 %v98
    %115 = vmatprep.subr.bf16.mxu0 0
    %116 = vmatpush1.bf16.msra.mxu0 %v97
    %117 = vmatprep.subr.bf16.mxu0 0
    %118 = vmatpush1.bf16.msra.mxu0 %v96
    %119 = vmatprep.subr.bf16.mxu0 0
    %120 = vmatpush1.bf16.msra.mxu0 %v95
    %121 = vmatprep.subr.bf16.mxu0 0
    %122 = vmatpush1.bf16.msra.mxu0 %v94
    %123 = vmatprep.subr.bf16.mxu0 0
    %124 = vmatpush1.bf16.msra.mxu0 %v93
    %125 = vmatprep.subr.bf16.mxu0 0
    %126 = vmatpush2.bf16.msra.mxu0 0
    %127 = vmatprep.subr.bf16.mxu0 0
    %128 = vmatpush2.bf16.msra.mxu0 0
    %129 = vmatprep.subr.bf16.mxu0 0
    %130 = vmatpush2.bf16.msra.mxu0 0
    %131 = vmatprep.subr.bf16.mxu0 0
    %132 = vmatpush2.bf16.msra.mxu0 0
    %133 = vmatprep.subr.bf16.mxu0 0
    %134 = vmatpush2.bf16.msra.mxu0 0
    %135 = vmatprep.subr.bf16.mxu0 0
    %136 = vmatpush2.bf16.msra.mxu0 0
    %137 = vmatprep.subr.bf16.mxu0 0
    %138 = vmatpush2.bf16.msra.mxu0 0
    %139 = vmatprep.subr.bf16.mxu0 0
    %140 = vmatpush2.bf16.msra.mxu0 0
    %141 = vmatprep.mubr.bf16.mxu0 0
    %142 = vmatmul.mubr.bf16.gmra.mxu0 %v59
    %v143 = vpop.f32.mrf.mxu0
    %v144 = vadd.f32 %v53, %v143
    %v145 = vpop.f32.mrf.mxu0
    %v146 = vpop.f32.mrf.mxu0
    %v147 = vadd.f32 %v54, %v146
    %v148 = vpop.f32.mrf.mxu0
    %149 = vdwg.mxu0
    %v150 = vmax.f32 %v144, 0.0
    %v151 = vmax.f32 %v147, 0.0
    %v152 = vpack.c.bf16 %v151, %v150
    %v153 = vld [vmem:[#allocation2] sm:$0xf]
    %v154 = vld [vmem:[#allocation2 + $0x4] sm:$0xf]
    %v155 = vld [vmem:[#allocation2 + $0x8] sm:$0xf]
    %v156 = vld [vmem:[#allocation2 + $0xc] sm:$0xf]
    %v157 = vld [vmem:[#allocation2 + $0x10] sm:$0xf]
    %v158 = vld [vmem:[#allocation2 + $0x14] sm:$0xf]
    %v159 = vld [vmem:[#allocation2 + $0x18] sm:$0xf]
    %v160 = vld [vmem:[#allocation2 + $0x1c] sm:$0xf]
    %v161 = vld [vmem:[#allocation2 + $0x20] sm:$0xf]
    %v162 = vld [vmem:[#allocation2 + $0x24] sm:$0xf]
    %v163 = vld [vmem:[#allocation2 + $0x28] sm:$0xf]
    %v164 = vld [vmem:[#allocation2 + $0x2c] sm:$0xf]
    %v165 = vld [vmem:[#allocation2 + $0x30] sm:$0xf]
    %v166 = vld [vmem:[#allocation2 + $0x34] sm:$0xf]
    %v167 = vld [vmem:[#allocation2 + $0x38] sm:$0xf]
    %v168 = vld [vmem:[#allocation2 + $0x3c] sm:$0xf]
    %v169 = vld [vmem:[%s4] sm:$0xff]
    %v170 = vld [vmem:[%s4 + $0x8] sm:$0xff]
    %v187 = vunpack.c.l.b16 %v153
    %v188 = vunpack.c.l.b16 %v154
    %v189 = vunpack.c.l.b16 %v155
    %v190 = vunpack.c.l.b16 %v156
    %v191 = vunpack.c.l.b16 %v157
    %v192 = vunpack.c.l.b16 %v158
    %v193 = vunpack.c.l.b16 %v159
    %v194 = vunpack.c.l.b16 %v160
    %v195 = vunpack.c.l.b16 %v161
    %v196 = vunpack.c.l.b16 %v162
    %v197 = vunpack.c.l.b16 %v163
    %v198 = vunpack.c.l.b16 %v164
    %v199 = vunpack.c.l.b16 %v165
    %v200 = vunpack.c.l.b16 %v166
    %v201 = vunpack.c.l.b16 %v167
    %v202 = vunpack.c.l.b16 %v168
    %v203 = vpack.c.b16 %v188, %v187
    %v204 = vpack.c.b16 %v190, %v189
    %v205 = vpack.c.b16 %v192, %v191
    %v206 = vpack.c.b16 %v194, %v193
    %v207 = vpack.c.b16 %v196, %v195
    %v208 = vpack.c.b16 %v198, %v197
    %v209 = vpack.c.b16 %v200, %v199
    %v210 = vpack.c.b16 %v202, %v201
    %219 = vmatprep.subr.bf16.mxu0 0
    %220 = vmatpush1.bf16.msra.mxu0 %v210
    %221 = vmatprep.subr.bf16.mxu0 0
    %222 = vmatpush1.bf16.msra.mxu0 %v209
    %223 = vmatprep.subr.bf16.mxu0 0
    %224 = vmatpush1.bf16.msra.mxu0 %v208
    %225 = vmatprep.subr.bf16.mxu0 0
    %226 = vmatpush1.bf16.msra.mxu0 %v207
    %227 = vmatprep.subr.bf16.mxu0 0
    %228 = vmatpush1.bf16.msra.mxu0 %v206
    %229 = vmatprep.subr.bf16.mxu0 0
    %230 = vmatpush1.bf16.msra.mxu0 %v205
    %231 = vmatprep.subr.bf16.mxu0 0
    %232 = vmatpush1.bf16.msra.mxu0 %v204
    %233 = vmatprep.subr.bf16.mxu0 0
    %234 = vmatpush1.bf16.msra.mxu0 %v203
    %235 = vmatprep.subr.bf16.mxu0 0
    %236 = vmatpush2.bf16.msra.mxu0 0
    %237 = vmatprep.subr.bf16.mxu0 0
    %238 = vmatpush2.bf16.msra.mxu0 0
    %239 = vmatprep.subr.bf16.mxu0 0
    %240 = vmatpush2.bf16.msra.mxu0 0
    %241 = vmatprep.subr.bf16.mxu0 0
    %242 = vmatpush2.bf16.msra.mxu0 0
    %243 = vmatprep.subr.bf16.mxu0 0
    %244 = vmatpush2.bf16.msra.mxu0 0
    %245 = vmatprep.subr.bf16.mxu0 0
    %246 = vmatpush2.bf16.msra.mxu0 0
    %247 = vmatprep.subr.bf16.mxu0 0
    %248 = vmatpush2.bf16.msra.mxu0 0
    %249 = vmatprep.subr.bf16.mxu0 0
    %250 = vmatpush2.bf16.msra.mxu0 0
    %251 = vmatprep.mubr.bf16.mxu0 0
    %252 = vmatmul.mubr.bf16.gmra.mxu0 %v152
    %v253 = vpop.f32.mrf.mxu0
    %v254 = vadd.f32 %v169, %v253
    %v255 = vpop.f32.mrf.mxu0
    %v256 = vpop.f32.mrf.mxu0
    %v257 = vadd.f32 %v170, %v256
    %v258 = vpop.f32.mrf.mxu0
    %259 = vdwg.mxu0
    %260 = vst [vmem:[%s5] sm:$0xff] %v254
    %261 = vst [vmem:[%s5 + $0x8] sm:$0xff] %v257
    // Predicated region
    $region26: #{_fused_mlp_forward.1} parent=1 // pred_check
      _
    $region27: #{_fused_mlp_forward.1} parent=1 // pred_check_branch
      %263 = sbr.rel (0) target = $region29
    $region28: #{_fused_mlp_forward.1} parent=1 // pred_region
      _
    $region29: #{_fused_mlp_forward.1} parent=1 // pred_fallthru
      _
    // Predicated region
    $region30: #{_fused_mlp_forward.1} parent=1 // pred_check
      _
    $region31: #{_fused_mlp_forward.1} parent=1 // pred_check_branch
      %265 = sbr.rel (0) target = $region33
    $region32: #{_fused_mlp_forward.1} parent=1 // pred_region
      _
    $region33: #{_fused_mlp_forward.1} parent=1 // pred_fallthru
      _
    %266 = vsyncpa [#allocation3], 1

</llo_original>
